<compile_context>
chip_gen: v7x
topology: tpu7x:2x2x1
jax: 0.10.0
libtpu: 0.0.40
codegen_flags: <defaults>
</compile_context>

<pallas_src>
import jax
import jax.numpy as jnp
from jax import lax
from jax.experimental import pallas as pl
from jax.experimental.pallas import tpu as pltpu


_DEFAULT_VMEM_BYTES = 64 << 20  # safe lower bound (v7x per-TC VMEM)


def _vmem_capacity_bytes() -> int:
    """Best-effort query of per-core VMEM capacity; conservative fallback."""
    try:
        info = pltpu.get_tpu_info()
        cap = getattr(info, "vmem_capacity_bytes", None)
        if cap:
            return int(cap)
    except Exception:
        pass
    return _DEFAULT_VMEM_BYTES


def _sublane_multiple(dtype) -> int:
    """Minimum sublane tile for this dtype (packed sublanes travel in groups)."""
    itemsize = jnp.dtype(dtype).itemsize
    return {4: 8, 2: 16, 1: 32}.get(itemsize, 8)


def _pick_row_tile(n_rows: int, d: int, dtype) -> int:
    """Largest dtype-aligned row tile whose block fits the per-block budget."""
    sub = _sublane_multiple(dtype)
    itemsize = jnp.dtype(dtype).itemsize
    vmem = _vmem_capacity_bytes()
    # Input & output blocks are each double-buffered (4x native block), plus the
    # f32 compute temporaries inside the kernel -> budget ~vmem/10 per native
    # block, capped at 8 MiB (plenty to amortize the ~0.35 us/step overhead).
    budget = min(vmem // 10, 8 << 20)
    rows = max(sub, budget // max(1, d * itemsize))
    rows = (rows // sub) * sub
    # Never exceed the (sublane-rounded) row count of the actual input.
    n_rounded = ((n_rows + sub - 1) // sub) * sub
    rows = min(rows, n_rounded)
    # Prefer a tile that evenly divides the padded row count (no ragged tail).
    while n_rounded % rows != 0 and rows > sub:
        rows -= sub
    return max(rows, sub)


def _make_kernel(power):
    p = float(power)
    if p == 2.0:
        # Fast path: VPU multiply for the square, one rsqrt per row, then a
        # single broadcast multiply for the write-back.
        def kernel(x_ref, o_ref):
            x = x_ref[...].astype(jnp.float32)
            inv = lax.rsqrt(jnp.sum(x * x, axis=1, keepdims=True))  # (rows, 1)
            o_ref[...] = (x * inv).astype(o_ref.dtype)
        return kernel

    is_int = p.is_integer()
    ip = int(p)

    def kernel(x_ref, o_ref):
        x = x_ref[...].astype(jnp.float32)
        if is_int:
            xp = lax.integer_pow(x, ip)        # exact for integer p, VPU muls
        else:
            xp = x ** p                        # log/exp path; NaN for x<0, like torch
        s = jnp.sum(xp, axis=1, keepdims=True)  # (rows, 1)
        inv = s ** (-1.0 / p)                   # transcendental only per row
        o_ref[...] = (x * inv).astype(o_ref.dtype)

    return kernel


def normalize(x: jax.Array, power=2.0, row_tile: int | None = None) -> jax.Array:
    """Lp-normalize each row of a (N, D) array, matching Normalize.forward."""
    assert x.ndim == 2, "expected (batch, features)"
    N, D = x.shape

    sub = _sublane_multiple(x.dtype)
    if row_tile is None:
        row_tile = _pick_row_tile(N, D, x.dtype)
    row_tile = max(sub, (row_tile // sub) * sub)

    # Pad rows to a tile multiple; padded rows are sliced off after the call.
    n_pad = (-N) % row_tile
    x_in = jnp.pad(x, ((0, n_pad), (0, 0)), constant_values=1) if n_pad else x
    n_total = N + n_pad

    kernel = _make_kernel(power)

    # Raise the scoped VMEM limit so large blocks actually compile on v5e/v6e
    # (defaults 16/32 MiB); stay under physical capacity on every generation.
    vmem_cap = _vmem_capacity_bytes()
    vmem_limit = int(min(vmem_cap * 0.9, 112 << 20))

    out = pl.pallas_call(
        kernel,
        out_shape=jax.ShapeDtypeStruct((n_total, D), x.dtype),
        grid_spec=pltpu.PrefetchScalarGridSpec(
            num_scalar_prefetch=0,
            grid=(n_total // row_tile,),
            in_specs=[pl.BlockSpec((row_tile, D), lambda i: (i, 0))],
            out_specs=pl.BlockSpec((row_tile, D), lambda i: (i, 0)),
        ),
        compiler_params=pltpu.CompilerParams(
            dimension_semantics=("parallel",),   # shards rows across v7x's 2 TCs
            vmem_limit_bytes=vmem_limit,
        ),
    )(x_in)

    return out[:N] if n_pad else out


if __name__ == "__main__":
    key = jax.random.PRNGKey(0)
    k1, k2 = jax.random.split(key)

    # Default p=2 on a small MLP-feature tensor (batch=8, hidden=32).
    x = jax.random.normal(k1, (8, 32), dtype=jnp.float32)
    out = jax.block_until_ready(normalize(x, power=2.0))
    ref = x / jnp.sqrt(jnp.sum(x * x, axis=1, keepdims=True))
    assert out.shape == x.shape and out.dtype == x.dtype
    assert jnp.allclose(out, ref, atol=1e-5, rtol=1e-5)

    # Generic even-integer power path (p=4), lane-dense D=128.
    y = jax.random.normal(k2, (16, 128), dtype=jnp.float32)
    out4 = jax.block_until_ready(normalize(y, power=4))
    ref4 = y / jnp.sum(y ** 4, axis=1, keepdims=True) ** 0.25
    assert jnp.allclose(out4, ref4, atol=1e-4, rtol=1e-4)

    print("KERNEL_OK")
</pallas_src>

<mosaic_0001>
module attributes {stable_mosaic.version = 11 : i64} {
  func.func @kernel(%arg0: i32, %arg1: memref<8x32xf32, #tpu.memory_space<vmem>>, %arg2: memref<8x32xf32, #tpu.memory_space<vmem>>) attributes {dimension_semantics = [#tpu.dimension_semantics<parallel>], iteration_bounds = array<i64: 1>, scalar_prefetch = 0 : i64, scratch_operands = 0 : i64, tpu.core_type = #tpu.core_type<tc>, window_params = [{transform_indices = @transform_0, window_bounds = array<i64: 8, 32>}, {transform_indices = @transform_1, window_bounds = array<i64: 8, 32>}]} {
    %c0 = arith.constant 0 : index
    %c0_0 = arith.constant 0 : index
    %0 = vector.load %arg1[%c0, %c0_0] : memref<8x32xf32, #tpu.memory_space<vmem>>, vector<8x32xf32>
    %1 = arith.mulf %0, %0 : vector<8x32xf32>
    %cst = arith.constant dense<0.000000e+00> : vector<8xf32>
    %2 = vector.multi_reduction <add>, %1, %cst [1] : vector<8x32xf32> to vector<8xf32>
    %3 = vector.shape_cast %2 : vector<8xf32> to vector<8x1xf32>
    %4 = math.rsqrt %3 : vector<8x1xf32>
    %5 = vector.broadcast %4 : vector<8x1xf32> to vector<8x32xf32>
    %6 = arith.mulf %0, %5 : vector<8x32xf32>
    %c0_1 = arith.constant 0 : index
    %c0_2 = arith.constant 0 : index
    %7 = vector.load %arg2[%c0_1, %c0_2] : memref<8x32xf32, #tpu.memory_space<vmem>>, vector<8x32xf32>
    tpu.vector_store %arg2[%c0_1, %c0_2], %6 {strides = array<i32>} : memref<8x32xf32, #tpu.memory_space<vmem>>, vector<8x32xf32>,
    return
  }
  func.func @transform_0(%arg0: i32) -> (i32, i32) {
    %c0_i32 = arith.constant 0 : i32
    %c0_i32_0 = arith.constant 0 : i32
    return %arg0, %c0_i32 : i32, i32
  }
  func.func @transform_1(%arg0: i32) -> (i32, i32) {
    %c0_i32 = arith.constant 0 : i32
    %c0_i32_0 = arith.constant 0 : i32
    return %arg0, %c0_i32 : i32, i32
  }
}

</mosaic_0001>

<llo_original>
// kernel: tpu_custom_call.1
$region0: #{tpu_custom_call.1}
  #allocation0 [shape = 'u32[]', space=smem, size = 0x4, offset = 0x4, fixed_abs, tag = 'smem constant byte address 0x4 - core index']
  #allocation1 [shape = 'u32[144,128]{1,0:T(1,128)}', space=vmem, size = 0x12000, scoped, tag = 'internal scratch']
  %s0 = inlined_call_operand.hbm [shape: f32[8,32], index: 0, kind: input, shape index: {}]
  %s1 = inlined_call_operand.hbm [shape: f32[8,32], index: 1, kind: output, shape index: {}]
  %s2 = sld [smem:[#allocation0]]
  $region18: #{tpu_custom_call.1} parent=0
    _
  %s4 = ssub.s32 1, %s2
  %s5 = scalar_select 0, %s4, %s2
  $region1: #{tpu_custom_call.1} parent=0
    #allocation2 [shape = 'u8[4096]{0}', space=vmem, size = 0x1000, scoped, tag = 'input window, operand 0, single buffered']
    #allocation3 [shape = 's32[1]{0}', space=sflag, size = 0x4, scoped, tag = 'scoped memory for tpu_custom_call.1']
    #allocation4 [shape = 's32[1]{0}', space=sflag, size = 0x4, scoped, tag = 'scoped memory for tpu_custom_call.1']
    #allocation5 [shape = 'u8[4096]{0}', space=vmem, size = 0x1000, scoped, tag = 'output window, operand 0, single buffered']
    %6 = vsyncpa [#allocation3], 0
    %7 = vsyncpa [#allocation4], 0
    // Predicated region
    $region2: #{tpu_custom_call.1} parent=1 // pred_check
      _
    $region3: #{tpu_custom_call.1} parent=1 // pred_check_branch
      %9 = sbr.rel (0) target = $region5
    $region4: #{tpu_custom_call.1} parent=1 // pred_region
      %s11 = ssub.s32 128, 128
      %12 = vsyncadd [#allocation3], %s11
      %s14 = sshll.u32 [#allocation2], 4
      %s15 = int_to_ptr.vmem [resolvable:$true] %s14
      %17 = dma.hbm_to_vmem [thread:$0]  %s0, 128, %s15, [#allocation3]
    $region5: #{tpu_custom_call.1} parent=1 // pred_fallthru
      _
    // Predicated region
    $region6: #{tpu_custom_call.1} parent=1 // pred_check
      _
    $region7: #{tpu_custom_call.1} parent=1 // pred_check_branch
      %19 = sbr.rel (0) target = $region9
    $region8: #{tpu_custom_call.1} parent=1 // pred_region
      %20 = dma.done [#allocation3], 128
    $region9: #{tpu_custom_call.1} parent=1 // pred_fallthru
      _
    %v21 = vld [vmem:[#allocation2] sm:$0xff]
    %v22 = vmul.f32 %v21, %v21
    %vm23 = vcmask 261120
    %v24 = vsel %vm23, %v22, 0.0
    %25 = vadd.xlane.f32.xlu0 %v24
    %v26 = vpop.xlane.xlu0 %25
    %v27 = vrsqrt.pop %v26
    %v28 = vmul.f32 %v21, %v27
    %29 = vst.msk [vmem:[#allocation5] sm:$0xff] %vm23, %v28
    // Predicated region
    $region10: #{tpu_custom_call.1} parent=1 // pred_check
      _
    $region11: #{tpu_custom_call.1} parent=1 // pred_check_branch
      %31 = sbr.rel (0) target = $region13
    $region12: #{tpu_custom_call.1} parent=1 // pred_region
      %s33 = ssub.s32 128, 128
      %34 = vsyncadd [#allocation4], %s33
      %s36 = sshll.u32 [#allocation5], 4
      %s37 = int_to_ptr.vmem [resolvable:$true] %s36
      %39 = dma.vmem_to_hbm [thread:$0]  %s37, 128, %s1, [#allocation4]
    $region13: #{tpu_custom_call.1} parent=1 // pred_fallthru
      _
    // Predicated region
    $region14: #{tpu_custom_call.1} parent=1 // pred_check
      _
    $region15: #{tpu_custom_call.1} parent=1 // pred_check_branch
      %41 = sbr.rel (0) target = $region17
    $region16: #{tpu_custom_call.1} parent=1 // pred_region
      %42 = dma.done [#allocation4], 128
    $region17: #{tpu_custom_call.1} parent=1 // pred_fallthru
      _
    %43 = vsyncpa [#allocation3], 1
    %44 = vsyncpa [#allocation4], 1

</llo_original>
